<compile_context>
chip_gen: v7x
topology: tpu7x:2x2x1
jax: 0.10.0
libtpu: 0.0.40
codegen_flags: <defaults>
</compile_context>

<pallas_src>
import functools

import jax
import jax.numpy as jnp
from jax import lax
from jax.experimental import pallas as pl
from jax.experimental.pallas import tpu as pltpu

SCALE_CLAMPER = 1e-4


def _round_up(a, b):
    return (a + b - 1) // b * b


def _softplus(x):
    # Matches torch.nn.Softplus(beta=1, threshold=20).
    safe = jnp.minimum(x, 20.0)
    return jnp.where(x > 20.0, x, jnp.log(1.0 + jnp.exp(safe)))


def combiner_kernel(z_ref, h_ref, w1_ref, b1_ref, w23_ref, b23_ref, mask_ref,
                    o_ref, *, K, P, W, HW, KK, C_Z, COLS1, COLS2):
    """One image per grid step.  Activations are channel-major (channels, H*W):
    the flattened spatial axis lives in lanes, so every elementwise op and the
    final store are unmasked full-lane ops."""

    def build_patch(x, cols):
        # x: (c_pad, HW) f32 register value, c_pad a multiple of 8.
        # Returns the im2col patch matrix (cols, HW) in bf16, built entirely in
        # registers: one XLU lane-roll + one full-lane mask multiply per tap.
        c_pad = x.shape[0]
        taps = []
        for idx in range(KK):
            dy, dx = divmod(idx, K)
            delta = (dy - P) * W + (dx - P)      # lane offset of the source pixel
            if delta == 0:                       # centre tap: no roll, no mask
                taps.append(x)
                continue
            t = pltpu.roll(x, (-delta) % HW, axis=1)     # out[m] = x[m + delta]
            taps.append(t * mask_ref[idx:idx + 1, :])    # zero out-of-image taps
        n_pad = cols - KK * c_pad                # pad contraction rows to mult of 16
        if n_pad:
            taps.append(jnp.zeros((n_pad, HW), jnp.float32))
        # All pieces are 8-row (f32 tile aligned) -> cheap layout-only concat.
        return jnp.concatenate(taps, axis=0).astype(jnp.bfloat16)

    # conv1 (z -> hidden) as ONE MXU dot; tanh / combine stay in f32 registers.
    p1 = build_patch(z_ref[...], COLS1)                               # (COLS1, HW) bf16
    c1 = jnp.dot(w1_ref[...], p1, preferred_element_type=jnp.float32) + b1_ref[...]
    hidden = 0.5 * (jnp.tanh(c1) + h_ref[...])                        # (CRP, HW) f32

    # conv2 & conv3 merged into ONE dot (loc rows stacked on scale rows);
    # taps are rolled directly from the register-resident `hidden`.
    p2 = build_patch(hidden, COLS2)                                   # (COLS2, HW) bf16
    out = jnp.dot(w23_ref[...], p2, preferred_element_type=jnp.float32) + b23_ref[...]

    # softplus + clamp on the scale rows via a row mask, then one unmasked
    # full-tile store; the loc/scale split happens in the wrapper.
    rows = lax.broadcasted_iota(jnp.int32, out.shape, 0)
    scale = jnp.maximum(_softplus(out), SCALE_CLAMPER)
    o_ref[...] = jnp.where(rows < C_Z, out, scale)


def conv_lstm_combiner(z_t_1, h_rnn, params, kernel_size):
    """z_t_1: (B, C_Z, H, W), h_rnn: (B, C_R, H, W) (PyTorch NCHW convention)."""
    B, C_Z, H, W = z_t_1.shape
    C_R = h_rnn.shape[1]
    K = kernel_size
    P = (K - 1) // 2
    KK = K * K
    HW = H * W
    M = B * HW

    CZP = _round_up(C_Z, 8)           # padded conv1 input channels
    CRP = _round_up(C_R, 8)           # padded hidden channels
    OUTP = _round_up(2 * C_Z, 8)      # loc rows stacked on scale rows
    COLS1 = _round_up(KK * CZP, 16)   # bf16 contraction dims padded to 16
    COLS2 = _round_up(KK * CRP, 16)
    f32 = jnp.float32

    # Channel-major, spatially flattened activations (lanes = B*H*W), channel
    # axis zero-padded to a sublane multiple.
    # TODO(synk): callers that already hold activations channel-major can skip
    # these NCHW<->channel-major layout copies around the kernel entirely.
    def to_cm(x, c, c_pad):
        xm = jnp.transpose(x, (1, 0, 2, 3)).reshape(c, M).astype(f32)
        return jnp.pad(xm, ((0, c_pad - c), (0, 0)))

    z_cm = to_cm(z_t_1, C_Z, CZP)
    h_cm = to_cm(h_rnn, C_R, CRP)

    # torch OIHW -> (C_out_pad, COLS); column order (tap, cin) matches the
    # patch rows built in the kernel.
    def to_mat(w_oihw, c_in_pad, cols, c_out_pad):
        o, i, kh, kw = w_oihw.shape
        wt = jnp.transpose(w_oihw, (0, 2, 3, 1))                       # (o,K,K,i)
        wt = jnp.pad(wt, ((0, c_out_pad - o), (0, 0), (0, 0), (0, c_in_pad - i)))
        wm = wt.reshape(c_out_pad, kh * kw * c_in_pad)
        return jnp.pad(wm, ((0, 0), (0, cols - kh * kw * c_in_pad)))

    w1 = to_mat(params["w1"], CZP, COLS1, CRP).astype(jnp.bfloat16)
    b1 = jnp.pad(params["b1"].astype(f32), (0, CRP - C_R)).reshape(CRP, 1)
    w23_raw = jnp.concatenate([params["w2"], params["w3"]], axis=0)    # (2*C_Z, C_R, K, K)
    w23 = to_mat(w23_raw, CRP, COLS2, OUTP).astype(jnp.bfloat16)
    b23 = jnp.pad(jnp.concatenate([params["b2"], params["b3"]]).astype(f32),
                  (0, OUTP - 2 * C_Z)).reshape(OUTP, 1)

    # Per-tap validity masks on the flattened H*W lane axis: zero every tap
    # whose source pixel falls outside the image (covers row, column and
    # batch/array-wrap cases of the circular roll).
    yy = jnp.arange(HW) // W
    xx = jnp.arange(HW) % W
    mask_rows = []
    for dy in range(K):
        for dx in range(K):
            sy = yy + dy - P
            sx = xx + dx - P
            mask_rows.append(((sy >= 0) & (sy < H) & (sx >= 0) & (sx < W)).astype(f32))
    masks = jnp.stack(mask_rows, axis=0)                               # (KK, HW)

    kernel = functools.partial(combiner_kernel, K=K, P=P, W=W, HW=HW, KK=KK,
                               C_Z=C_Z, COLS1=COLS1, COLS2=COLS2)

    out_cm = pl.pallas_call(
        kernel,
        out_shape=jax.ShapeDtypeStruct((OUTP, M), f32),
        grid_spec=pltpu.PrefetchScalarGridSpec(
            num_scalar_prefetch=0,
            grid=(B,),                                   # one image per step
            in_specs=[
                pl.BlockSpec((CZP, HW), lambda b: (0, b)),
                pl.BlockSpec((CRP, HW), lambda b: (0, b)),
                pl.BlockSpec((CRP, COLS1), lambda b: (0, 0)),
                pl.BlockSpec((CRP, 1), lambda b: (0, 0)),
                pl.BlockSpec((OUTP, COLS2), lambda b: (0, 0)),
                pl.BlockSpec((OUTP, 1), lambda b: (0, 0)),
                pl.BlockSpec((KK, HW), lambda b: (0, 0)),
            ],
            out_specs=pl.BlockSpec((OUTP, HW), lambda b: (0, b)),
        ),
        compiler_params=pltpu.CompilerParams(dimension_semantics=("parallel",)),
    )(z_cm, h_cm, w1, b1, w23, b23, masks)

    # channel-major (C, B*H*W) -> NCHW (interface parity with the PyTorch module)
    loc = jnp.transpose(out_cm[:C_Z].reshape(C_Z, B, H, W), (1, 0, 2, 3))
    scale = jnp.transpose(out_cm[C_Z:2 * C_Z].reshape(C_Z, B, H, W), (1, 0, 2, 3))
    return loc, scale


def ref_forward(z, h, params, K):
    """Pure-JAX f32 reference matching the PyTorch module (NCHW / OIHW)."""
    P = (K - 1) // 2

    def conv(x, w, b):
        y = lax.conv_general_dilated(
            x, w, (1, 1), [(P, P), (P, P)],
            dimension_numbers=("NCHW", "OIHW", "NCHW"),
            precision=lax.Precision.HIGHEST)
        return y + b[None, :, None, None]

    h_combined = 0.5 * (jnp.tanh(conv(z, params["w1"], params["b1"])) + h)
    loc = conv(h_combined, params["w2"], params["b2"])
    scale = jnp.maximum(_softplus(conv(h_combined, params["w3"], params["b3"])),
                        SCALE_CLAMPER)
    return loc, scale


if __name__ == "__main__":
    B, C_Z, C_R, H, W, K = 2, 4, 8, 16, 16, 3

    key = jax.random.PRNGKey(0)
    ks = jax.random.split(key, 8)
    params = {
        "w1": 0.1 * jax.random.normal(ks[0], (C_R, C_Z, K, K), jnp.float32),
        "b1": 0.1 * jax.random.normal(ks[1], (C_R,), jnp.float32),
        "w2": 0.1 * jax.random.normal(ks[2], (C_Z, C_R, K, K), jnp.float32),
        "b2": 0.1 * jax.random.normal(ks[3], (C_Z,), jnp.float32),
        "w3": 0.1 * jax.random.normal(ks[4], (C_Z, C_R, K, K), jnp.float32),
        "b3": 0.1 * jax.random.normal(ks[5], (C_Z,), jnp.float32),
    }
    z_t_1 = jax.random.normal(ks[6], (B, C_Z, H, W), jnp.float32)
    h_rnn = jax.random.normal(ks[7], (B, C_R, H, W), jnp.float32)

    run = jax.jit(functools.partial(conv_lstm_combiner, kernel_size=K))
    loc, scale = run(z_t_1, h_rnn, params)
    jax.block_until_ready((loc, scale))

    loc_ref, scale_ref = ref_forward(z_t_1, h_rnn, params, K)
    assert loc.shape == (B, C_Z, H, W) and scale.shape == (B, C_Z, H, W)
    # MXU operands are bf16 (f32 accumulation), so compare with bf16-level tolerance.
    assert jnp.allclose(loc, loc_ref, rtol=2e-2, atol=2e-2), "loc mismatch"
    assert jnp.allclose(scale, scale_ref, rtol=2e-2, atol=2e-2), "scale mismatch"
    assert bool(jnp.all(scale >= SCALE_CLAMPER))

    print("KERNEL_OK")
</pallas_src>

<mosaic_0001>
module attributes {stable_mosaic.version = 11 : i64} {
  func.func @combiner_kernel(%arg0: i32, %arg1: memref<8x256xf32, #tpu.memory_space<vmem>>, %arg2: memref<8x256xf32, #tpu.memory_space<vmem>>, %arg3: memref<8x80xbf16, #tpu.memory_space<vmem>>, %arg4: memref<8x1xf32, #tpu.memory_space<vmem>>, %arg5: memref<8x80xbf16, #tpu.memory_space<vmem>>, %arg6: memref<8x1xf32, #tpu.memory_space<vmem>>, %arg7: memref<9x256xf32, #tpu.memory_space<vmem>>, %arg8: memref<8x256xf32, #tpu.memory_space<vmem>>) attributes {dimension_semantics = [#tpu.dimension_semantics<parallel>], iteration_bounds = array<i64: 2>, scalar_prefetch = 0 : i64, scratch_operands = 0 : i64, tpu.core_type = #tpu.core_type<tc>, window_params = [{transform_indices = @transform_0, window_bounds = array<i64: 8, 256>}, {transform_indices = @transform_1, window_bounds = array<i64: 8, 256>}, {pipeline_mode = #tpu.pipeline_mode<synchronous>, transform_indices = @transform_2, window_bounds = array<i64: 8, 80>}, {pipeline_mode = #tpu.pipeline_mode<synchronous>, transform_indices = @transform_3, window_bounds = array<i64: 8, 1>}, {pipeline_mode = #tpu.pipeline_mode<synchronous>, transform_indices = @transform_4, window_bounds = array<i64: 8, 80>}, {pipeline_mode = #tpu.pipeline_mode<synchronous>, transform_indices = @transform_5, window_bounds = array<i64: 8, 1>}, {pipeline_mode = #tpu.pipeline_mode<synchronous>, transform_indices = @transform_6, window_bounds = array<i64: 9, 256>}, {transform_indices = @transform_7, window_bounds = array<i64: 8, 256>}]} {
    %c0 = arith.constant 0 : index
    %c0_0 = arith.constant 0 : index
    %0 = vector.load %arg1[%c0, %c0_0] : memref<8x256xf32, #tpu.memory_space<vmem>>, vector<8x256xf32>
    %c17_i32 = arith.constant 17 : i32
    %1 = tpu.dynamic_rotate %0 by %c17_i32 dim 1 : vector<8x256xf32>, i32 -> vector<8x256xf32>
    %c0_1 = arith.constant 0 : index
    %c0_2 = arith.constant 0 : index
    %2 = vector.load %arg7[%c0_1, %c0_2] : memref<9x256xf32, #tpu.memory_space<vmem>>, vector<1x256xf32>
    %3 = vector.broadcast %2 : vector<1x256xf32> to vector<8x256xf32>
    %4 = arith.mulf %1, %3 : vector<8x256xf32>
    %c16_i32 = arith.constant 16 : i32
    %5 = tpu.dynamic_rotate %0 by %c16_i32 dim 1 : vector<8x256xf32>, i32 -> vector<8x256xf32>
    %c1 = arith.constant 1 : index
    %c0_3 = arith.constant 0 : index
    %6 = vector.load %arg7[%c1, %c0_3] : memref<9x256xf32, #tpu.memory_space<vmem>>, vector<1x256xf32>
    %7 = vector.broadcast %6 : vector<1x256xf32> to vector<8x256xf32>
    %8 = arith.mulf %5, %7 : vector<8x256xf32>
    %c15_i32 = arith.constant 15 : i32
    %9 = tpu.dynamic_rotate %0 by %c15_i32 dim 1 : vector<8x256xf32>, i32 -> vector<8x256xf32>
    %c2 = arith.constant 2 : index
    %c0_4 = arith.constant 0 : index
    %10 = vector.load %arg7[%c2, %c0_4] : memref<9x256xf32, #tpu.memory_space<vmem>>, vector<1x256xf32>
    %11 = vector.broadcast %10 : vector<1x256xf32> to vector<8x256xf32>
    %12 = arith.mulf %9, %11 : vector<8x256xf32>
    %c1_i32 = arith.constant 1 : i32
    %13 = tpu.dynamic_rotate %0 by %c1_i32 dim 1 : vector<8x256xf32>, i32 -> vector<8x256xf32>
    %c3 = arith.constant 3 : index
    %c0_5 = arith.constant 0 : index
    %14 = vector.load %arg7[%c3, %c0_5] : memref<9x256xf32, #tpu.memory_space<vmem>>, vector<1x256xf32>
    %15 = vector.broadcast %14 : vector<1x256xf32> to vector<8x256xf32>
    %16 = arith.mulf %13, %15 : vector<8x256xf32>
    %c255_i32 = arith.constant 255 : i32
    %17 = tpu.dynamic_rotate %0 by %c255_i32 dim 1 : vector<8x256xf32>, i32 -> vector<8x256xf32>
    %c5 = arith.constant 5 : index
    %c0_6 = arith.constant 0 : index
    %18 = vector.load %arg7[%c5, %c0_6] : memref<9x256xf32, #tpu.memory_space<vmem>>, vector<1x256xf32>
    %19 = vector.broadcast %18 : vector<1x256xf32> to vector<8x256xf32>
    %20 = arith.mulf %17, %19 : vector<8x256xf32>
    %c241_i32 = arith.constant 241 : i32
    %21 = tpu.dynamic_rotate %0 by %c241_i32 dim 1 : vector<8x256xf32>, i32 -> vector<8x256xf32>
    %c6 = arith.constant 6 : index
    %c0_7 = arith.constant 0 : index
    %22 = vector.load %arg7[%c6, %c0_7] : memref<9x256xf32, #tpu.memory_space<vmem>>, vector<1x256xf32>
    %23 = vector.broadcast %22 : vector<1x256xf32> to vector<8x256xf32>
    %24 = arith.mulf %21, %23 : vector<8x256xf32>
    %c240_i32 = arith.constant 240 : i32
    %25 = tpu.dynamic_rotate %0 by %c240_i32 dim 1 : vector<8x256xf32>, i32 -> vector<8x256xf32>
    %c7 = arith.constant 7 : index
    %c0_8 = arith.constant 0 : index
    %26 = vector.load %arg7[%c7, %c0_8] : memref<9x256xf32, #tpu.memory_space<vmem>>, vector<1x256xf32>
    %27 = vector.broadcast %26 : vector<1x256xf32> to vector<8x256xf32>
    %28 = arith.mulf %25, %27 : vector<8x256xf32>
    %c239_i32 = arith.constant 239 : i32
    %29 = tpu.dynamic_rotate %0 by %c239_i32 dim 1 : vector<8x256xf32>, i32 -> vector<8x256xf32>
    %c8 = arith.constant 8 : index
    %c0_9 = arith.constant 0 : index
    %30 = vector.load %arg7[%c8, %c0_9] : memref<9x256xf32, #tpu.memory_space<vmem>>, vector<1x256xf32>
    %31 = vector.broadcast %30 : vector<1x256xf32> to vector<8x256xf32>
    %32 = arith.mulf %29, %31 : vector<8x256xf32>
    %cst = arith.constant 0.000000e+00 : f32
    %33 = vector.broadcast %cst : f32 to vector<8x256xf32>
    %34 = tpu.concatenate %4, %8, %12, %16, %0, %20, %24, %28, %32, %33 in 0 : vector<8x256xf32>, vector<8x256xf32>, vector<8x256xf32>, vector<8x256xf32>, vector<8x256xf32>, vector<8x256xf32>, vector<8x256xf32>, vector<8x256xf32>, vector<8x256xf32>, vector<8x256xf32> -> vector<80x256xf32>
    %35 = arith.truncf %34 : vector<80x256xf32> to vector<80x256xbf16>
    %c0_10 = arith.constant 0 : index
    %c0_11 = arith.constant 0 : index
    %36 = vector.load %arg3[%c0_10, %c0_11] : memref<8x80xbf16, #tpu.memory_space<vmem>>, vector<8x80xbf16>
    %cst_12 = arith.constant dense<0.000000e+00> : vector<8x256xf32>
    %37 = tpu.matmul %36, %35, %cst_12 {dimension_numbers = #tpu.dot_dimension_numbers<[1], [0], [0], [1], [0, 0, 1, 1], [], []>} : vector<8x80xbf16>, vector<80x256xbf16>, vector<8x256xf32> -> vector<8x256xf32>
    %c0_13 = arith.constant 0 : index
    %c0_14 = arith.constant 0 : index
    %38 = vector.load %arg4[%c0_13, %c0_14] : memref<8x1xf32, #tpu.memory_space<vmem>>, vector<8x1xf32>
    %39 = vector.broadcast %38 : vector<8x1xf32> to vector<8x256xf32>
    %40 = arith.addf %37, %39 : vector<8x256xf32>
    %41 = math.tanh %40 : vector<8x256xf32>
    %c0_15 = arith.constant 0 : index
    %c0_16 = arith.constant 0 : index
    %42 = vector.load %arg2[%c0_15, %c0_16] : memref<8x256xf32, #tpu.memory_space<vmem>>, vector<8x256xf32>
    %43 = arith.addf %41, %42 : vector<8x256xf32>
    %cst_17 = arith.constant 5.000000e-01 : f32
    %44 = vector.broadcast %cst_17 : f32 to vector<8x256xf32>
    %45 = arith.mulf %44, %43 : vector<8x256xf32>
    %c17_i32_18 = arith.constant 17 : i32
    %46 = tpu.dynamic_rotate %45 by %c17_i32_18 dim 1 : vector<8x256xf32>, i32 -> vector<8x256xf32>
    %c0_19 = arith.constant 0 : index
    %c0_20 = arith.constant 0 : index
    %47 = vector.load %arg7[%c0_19, %c0_20] : memref<9x256xf32, #tpu.memory_space<vmem>>, vector<1x256xf32>
    %48 = vector.broadcast %47 : vector<1x256xf32> to vector<8x256xf32>
    %49 = arith.mulf %46, %48 : vector<8x256xf32>
    %c16_i32_21 = arith.constant 16 : i32
    %50 = tpu.dynamic_rotate %45 by %c16_i32_21 dim 1 : vector<8x256xf32>, i32 -> vector<8x256xf32>
    %c1_22 = arith.constant 1 : index
    %c0_23 = arith.constant 0 : index
    %51 = vector.load %arg7[%c1_22, %c0_23] : memref<9x256xf32, #tpu.memory_space<vmem>>, vector<1x256xf32>
    %52 = vector.broadcast %51 : vector<1x256xf32> to vector<8x256xf32>
    %53 = arith.mulf %50, %52 : vector<8x256xf32>
    %c15_i32_24 = arith.constant 15 : i32
    %54 = tpu.dynamic_rotate %45 by %c15_i32_24 dim 1 : vector<8x256xf32>, i32 -> vector<8x256xf32>
    %c2_25 = arith.constant 2 : index
    %c0_26 = arith.constant 0 : index
    %55 = vector.load %arg7[%c2_25, %c0_26] : memref<9x256xf32, #tpu.memory_space<vmem>>, vector<1x256xf32>
    %56 = vector.broadcast %55 : vector<1x256xf32> to vector<8x256xf32>
    %57 = arith.mulf %54, %56 : vector<8x256xf32>
    %c1_i32_27 = arith.constant 1 : i32
    %58 = tpu.dynamic_rotate %45 by %c1_i32_27 dim 1 : vector<8x256xf32>, i32 -> vector<8x256xf32>
    %c3_28 = arith.constant 3 : index
    %c0_29 = arith.constant 0 : index
    %59 = vector.load %arg7[%c3_28, %c0_29] : memref<9x256xf32, #tpu.memory_space<vmem>>, vector<1x256xf32>
    %60 = vector.broadcast %59 : vector<1x256xf32> to vector<8x256xf32>
    %61 = arith.mulf %58, %60 : vector<8x256xf32>
    %c255_i32_30 = arith.constant 255 : i32
    %62 = tpu.dynamic_rotate %45 by %c255_i32_30 dim 1 : vector<8x256xf32>, i32 -> vector<8x256xf32>
    %c5_31 = arith.constant 5 : index
    %c0_32 = arith.constant 0 : index
    %63 = vector.load %arg7[%c5_31, %c0_32] : memref<9x256xf32, #tpu.memory_space<vmem>>, vector<1x256xf32>
    %64 = vector.broadcast %63 : vector<1x256xf32> to vector<8x256xf32>
    %65 = arith.mulf %62, %64 : vector<8x256xf32>
    %c241_i32_33 = arith.constant 241 : i32
    %66 = tpu.dynamic_rotate %45 by %c241_i32_33 dim 1 : vector<8x256xf32>, i32 -> vector<8x256xf32>
    %c6_34 = arith.constant 6 : index
    %c0_35 = arith.constant 0 : index
    %67 = vector.load %arg7[%c6_34, %c0_35] : memref<9x256xf32, #tpu.memory_space<vmem>>, vector<1x256xf32>
    %68 = vector.broadcast %67 : vector<1x256xf32> to vector<8x256xf32>
    %69 = arith.mulf %66, %68 : vector<8x256xf32>
    %c240_i32_36 = arith.constant 240 : i32
    %70 = tpu.dynamic_rotate %45 by %c240_i32_36 dim 1 : vector<8x256xf32>, i32 -> vector<8x256xf32>
    %c7_37 = arith.constant 7 : index
    %c0_38 = arith.constant 0 : index
    %71 = vector.load %arg7[%c7_37, %c0_38] : memref<9x256xf32, #tpu.memory_space<vmem>>, vector<1x256xf32>
    %72 = vector.broadcast %71 : vector<1x256xf32> to vector<8x256xf32>
    %73 = arith.mulf %70, %72 : vector<8x256xf32>
    %c239_i32_39 = arith.constant 239 : i32
    %74 = tpu.dynamic_rotate %45 by %c239_i32_39 dim 1 : vector<8x256xf32>, i32 -> vector<8x256xf32>
    %c8_40 = arith.constant 8 : index
    %c0_41 = arith.constant 0 : index
    %75 = vector.load %arg7[%c8_40, %c0_41] : memref<9x256xf32, #tpu.memory_space<vmem>>, vector<1x256xf32>
    %76 = vector.broadcast %75 : vector<1x256xf32> to vector<8x256xf32>
    %77 = arith.mulf %74, %76 : vector<8x256xf32>
    %cst_42 = arith.constant 0.000000e+00 : f32
    %78 = vector.broadcast %cst_42 : f32 to vector<8x256xf32>
    %79 = tpu.concatenate %49, %53, %57, %61, %45, %65, %69, %73, %77, %78 in 0 : vector<8x256xf32>, vector<8x256xf32>, vector<8x256xf32>, vector<8x256xf32>, vector<8x256xf32>, vector<8x256xf32>, vector<8x256xf32>, vector<8x256xf32>, vector<8x256xf32>, vector<8x256xf32> -> vector<80x256xf32>
    %80 = arith.truncf %79 : vector<80x256xf32> to vector<80x256xbf16>
    %c0_43 = arith.constant 0 : index
    %c0_44 = arith.constant 0 : index
    %81 = vector.load %arg5[%c0_43, %c0_44] : memref<8x80xbf16, #tpu.memory_space<vmem>>, vector<8x80xbf16>
    %cst_45 = arith.constant dense<0.000000e+00> : vector<8x256xf32>
    %82 = tpu.matmul %81, %80, %cst_45 {dimension_numbers = #tpu.dot_dimension_numbers<[1], [0], [0], [1], [0, 0, 1, 1], [], []>} : vector<8x80xbf16>, vector<80x256xbf16>, vector<8x256xf32> -> vector<8x256xf32>
    %c0_46 = arith.constant 0 : index
    %c0_47 = arith.constant 0 : index
    %83 = vector.load %arg6[%c0_46, %c0_47] : memref<8x1xf32, #tpu.memory_space<vmem>>, vector<8x1xf32>
    %84 = vector.broadcast %83 : vector<8x1xf32> to vector<8x256xf32>
    %85 = arith.addf %82, %84 : vector<8x256xf32>
    %86 = tpu.iota {dimensions = array<i32: 0>} : vector<8x256xi32>
    %cst_48 = arith.constant 2.000000e+01 : f32
    %87 = vector.broadcast %cst_48 : f32 to vector<8x256xf32>
    %88 = arith.minimumf %85, %87 : vector<8x256xf32>
    %cst_49 = arith.constant 2.000000e+01 : f32
    %89 = vector.broadcast %cst_49 : f32 to vector<8x256xf32>
    %90 = arith.cmpf ogt, %85, %89 : vector<8x256xf32>
    %91 = math.exp %88 : vector<8x256xf32>
    %cst_50 = arith.constant 1.000000e+00 : f32
    %92 = vector.broadcast %cst_50 : f32 to vector<8x256xf32>
    %93 = arith.addf %92, %91 : vector<8x256xf32>
    %94 = math.log %93 : vector<8x256xf32>
    %95 = arith.select %90, %85, %94 : vector<8x256xi1>, vector<8x256xf32>
    %cst_51 = arith.constant 9.99999974E-5 : f32
    %96 = vector.broadcast %cst_51 : f32 to vector<8x256xf32>
    %97 = arith.maximumf %95, %96 : vector<8x256xf32>
    %c4_i32 = arith.constant 4 : i32
    %98 = vector.broadcast %c4_i32 : i32 to vector<8x256xi32>
    %99 = arith.cmpi slt, %86, %98 : vector<8x256xi32>
    %100 = arith.select %99, %85, %97 : vector<8x256xi1>, vector<8x256xf32>
    %c0_52 = arith.constant 0 : index
    %c0_53 = arith.constant 0 : index
    %101 = vector.load %arg8[%c0_52, %c0_53] : memref<8x256xf32, #tpu.memory_space<vmem>>, vector<8x256xf32>
    tpu.vector_store %arg8[%c0_52, %c0_53], %100 {strides = array<i32>} : memref<8x256xf32, #tpu.memory_space<vmem>>, vector<8x256xf32>,
    return
  }
  func.func @transform_0(%arg0: i32) -> (i32, i32) {
    %c0_i32 = arith.constant 0 : i32
    %c0_i32_0 = arith.constant 0 : i32
    return %c0_i32, %arg0 : i32, i32
  }
  func.func @transform_1(%arg0: i32) -> (i32, i32) {
    %c0_i32 = arith.constant 0 : i32
    %c0_i32_0 = arith.constant 0 : i32
    return %c0_i32, %arg0 : i32, i32
  }
  func.func @transform_2(%arg0: i32) -> (i32, i32) {
    %c0_i32 = arith.constant 0 : i32
    %c0_i32_0 = arith.constant 0 : i32
    %c0_i32_1 = arith.constant 0 : i32
    return %c0_i32, %c0_i32_0 : i32, i32
  }
  func.func @transform_3(%arg0: i32) -> (i32, i32) {
    %c0_i32 = arith.constant 0 : i32
    %c0_i32_0 = arith.constant 0 : i32
    %c0_i32_1 = arith.constant 0 : i32
    return %c0_i32, %c0_i32_0 : i32, i32
  }
  func.func @transform_4(%arg0: i32) -> (i32, i32) {
    %c0_i32 = arith.constant 0 : i32
    %c0_i32_0 = arith.constant 0 : i32
    %c0_i32_1 = arith.constant 0 : i32
    return %c0_i32, %c0_i32_0 : i32, i32
  }
  func.func @transform_5(%arg0: i32) -> (i32, i32) {
    %c0_i32 = arith.constant 0 : i32
    %c0_i32_0 = arith.constant 0 : i32
    %c0_i32_1 = arith.constant 0 : i32
    return %c0_i32, %c0_i32_0 : i32, i32
  }
  func.func @transform_6(%arg0: i32) -> (i32, i32) {
    %c0_i32 = arith.constant 0 : i32
    %c0_i32_0 = arith.constant 0 : i32
    %c0_i32_1 = arith.constant 0 : i32
    return %c0_i32, %c0_i32_0 : i32, i32
  }
  func.func @transform_7(%arg0: i32) -> (i32, i32) {
    %c0_i32 = arith.constant 0 : i32
    %c0_i32_0 = arith.constant 0 : i32
    return %c0_i32, %arg0 : i32, i32
  }
}

</mosaic_0001>

<llo_original>
// kernel: conv_lstm_combiner.1
$region0: #{conv_lstm_combiner.1}
  #allocation0 [shape = 'u32[]', space=smem, size = 0x4, offset = 0x4, fixed_abs, tag = 'smem constant byte address 0x4 - core index']
  #allocation1 [shape = 'u32[144,128]{1,0:T(1,128)}', space=vmem, size = 0x12000, scoped, tag = 'internal scratch']
  %s0 = inlined_call_operand.vmem [shape: f32[8,512], index: 0, kind: input, shape index: {}]
  %s1 = inlined_call_operand.vmem [shape: f32[8,512], index: 1, kind: input, shape index: {}]
  %s2 = inlined_call_operand.vmem [shape: bf16[8,80], index: 2, kind: input, shape index: {}]
  %s3 = inlined_call_operand.vmem [shape: f32[8,1], index: 3, kind: input, shape index: {}]
  %s4 = inlined_call_operand.vmem [shape: bf16[8,80], index: 4, kind: input, shape index: {}]
  %s5 = inlined_call_operand.vmem [shape: f32[8,1], index: 5, kind: input, shape index: {}]
  %s6 = inlined_call_operand.vmem [shape: f32[9,256], index: 6, kind: input, shape index: {}]
  %s7 = inlined_call_operand.vmem [shape: f32[8,512], index: 7, kind: output, shape index: {}]
  %s8 = sld [smem:[#allocation0]]
  $region61: #{conv_lstm_combiner.1} parent=0
    _
  %s10 = ssub.s32 1, %s8
  %s11 = scalar_select 0, %s10, %s8
  loop: start=0, step=1, limit=4
  $region2: #{conv_lstm_combiner.1} parent=0 // loop_pre_header
    _
  $region3: #{conv_lstm_combiner.1} parent=0 // loop_header
    %s13 = sphi 0, %s17
    %p14 = scmp.ge.s32.totalorder %s13, 4
    %s23 = sphi 0, %s25
    %s26 = sphi 0, %s23
    %s27 = sphi 0, %s26
    %s43 = sphi 0, %s27
    %s49 = sphi 0, %s51
    %s52 = sphi 0, %s49
    %s53 = sphi 0, %s52
    %s69 = sphi 0, %s53
    %s73 = sphi 0, %s73
    %s75 = sphi 0, %s73
    %s76 = sphi 0, %s75
    %s90 = sphi 0, %s76
    %s94 = sphi 0, %s94
    %s96 = sphi 0, %s94
    %s97 = sphi 0, %s96
    %s111 = sphi 0, %s97
    %s115 = sphi 0, %s115
    %s117 = sphi 0, %s115
    %s118 = sphi 0, %s117
    %s132 = sphi 0, %s118
    %s136 = sphi 0, %s136
    %s138 = sphi 0, %s136
    %s139 = sphi 0, %s138
    %s153 = sphi 0, %s139
    %s157 = sphi 0, %s157
    %s159 = sphi 0, %s157
    %s160 = sphi 0, %s159
    %s174 = sphi 0, %s160
    %s180 = sphi 0, %s182
    %s183 = sphi 0, %s180
    %s184 = sphi 0, %s183
    %s200 = sphi 0, %s184
  $region4: #{conv_lstm_combiner.1} parent=0 // loop_header_branch
    %16 = sbr.rel (%p14) target = $region8
  $region5: #{conv_lstm_combiner.1} parent=0 // loop_body
    %s18 = ssub.s32 %s13, 1
    %s19 = ssub.s32 %s13, 2
    %s20 = sadd.s32 %s13, 1
    %s21 = ssub.s32 %s13, %s20
    %p22 = scmp.eq.s32.totalorder %s21, 0
    %s24 = sadd.s32 %s23, 1
    %s25 = scalar_select %p22, %s23, %s24
    %p28 = pneg %p22
    %p29 = scmp.eq.s32.totalorder %s13, 1
    %p30 = por %p28, %p29
    %p31 = scmp.ne.s32.totalorder %s23, %s26
    %p32 = scmp.eq.s32.totalorder %s13, 0
    %p33 = por %p31, %p32
    %p34 = scmp.ne.s32.totalorder %s23, %s26
    %p35 = scmp.eq.s32.totalorder %s18, 1
    %p36 = por %p34, %p35
    %p37 = scmp.ne.s32.totalorder %s26, %s27
    %p38 = scmp.eq.s32.totalorder %s18, 0
    %p39 = por %p37, %p38
    %p40 = scmp.ne.s32.totalorder %s26, %s27
    %p41 = scmp.eq.s32.totalorder %s19, 1
    %p42 = por %p40, %p41
    %p44 = scmp.ne.s32.totalorder %s27, %s43
    %p45 = scmp.eq.s32.totalorder %s19, 0
    %p46 = por %p44, %p45
    %s47 = ssub.s32 %s13, %s20
    %p48 = scmp.eq.s32.totalorder %s47, 0
    %s50 = sadd.s32 %s49, 1
    %s51 = scalar_select %p48, %s49, %s50
    %p54 = pneg %p48
    %p55 = scmp.eq.s32.totalorder %s13, 1
    %p56 = por %p54, %p55
    %p57 = scmp.ne.s32.totalorder %s49, %s52
    %p58 = scmp.eq.s32.totalorder %s13, 0
    %p59 = por %p57, %p58
    %p60 = scmp.ne.s32.totalorder %s49, %s52
    %p61 = scmp.eq.s32.totalorder %s18, 1
    %p62 = por %p60, %p61
    %p63 = scmp.ne.s32.totalorder %s52, %s53
    %p64 = scmp.eq.s32.totalorder %s18, 0
    %p65 = por %p63, %p64
    %p66 = scmp.ne.s32.totalorder %s52, %s53
    %p67 = scmp.eq.s32.totalorder %s19, 1
    %p68 = por %p66, %p67
    %p70 = scmp.ne.s32.totalorder %s53, %s69
    %p71 = scmp.eq.s32.totalorder %s19, 0
    %p72 = por %p70, %p71
    %s74 = sadd.s32 %s73, 1
    %p77 = scmp.eq.s32.totalorder %s13, 1
    %p78 = scmp.ne.s32.totalorder %s73, %s75
    %p79 = scmp.eq.s32.totalorder %s13, 0
    %p80 = por %p78, %p79
    %p81 = scmp.ne.s32.totalorder %s73, %s75
    %p82 = scmp.eq.s32.totalorder %s18, 1
    %p83 = por %p81, %p82
    %p84 = scmp.ne.s32.totalorder %s75, %s76
    %p85 = scmp.eq.s32.totalorder %s18, 0
    %p86 = por %p84, %p85
    %p87 = scmp.ne.s32.totalorder %s75, %s76
    %p88 = scmp.eq.s32.totalorder %s19, 1
    %p89 = por %p87, %p88
    %p91 = scmp.ne.s32.totalorder %s76, %s90
    %p92 = scmp.eq.s32.totalorder %s19, 0
    %p93 = por %p91, %p92
    %s95 = sadd.s32 %s94, 1
    %p98 = scmp.eq.s32.totalorder %s13, 1
    %p99 = scmp.ne.s32.totalorder %s94, %s96
    %p100 = scmp.eq.s32.totalorder %s13, 0
    %p101 = por %p99, %p100
    %p102 = scmp.ne.s32.totalorder %s94, %s96
    %p103 = scmp.eq.s32.totalorder %s18, 1
    %p104 = por %p102, %p103
    %p105 = scmp.ne.s32.totalorder %s96, %s97
    %p106 = scmp.eq.s32.totalorder %s18, 0
    %p107 = por %p105, %p106
    %p108 = scmp.ne.s32.totalorder %s96, %s97
    %p109 = scmp.eq.s32.totalorder %s19, 1
    %p110 = por %p108, %p109
    %p112 = scmp.ne.s32.totalorder %s97, %s111
    %p113 = scmp.eq.s32.totalorder %s19, 0
    %p114 = por %p112, %p113
    %s116 = sadd.s32 %s115, 1
    %p119 = scmp.eq.s32.totalorder %s13, 1
    %p120 = scmp.ne.s32.totalorder %s115, %s117
    %p121 = scmp.eq.s32.totalorder %s13, 0
    %p122 = por %p120, %p121
    %p123 = scmp.ne.s32.totalorder %s115, %s117
    %p124 = scmp.eq.s32.totalorder %s18, 1
    %p125 = por %p123, %p124
    %p126 = scmp.ne.s32.totalorder %s117, %s118
    %p127 = scmp.eq.s32.totalorder %s18, 0
    %p128 = por %p126, %p127
    %p129 = scmp.ne.s32.totalorder %s117, %s118
    %p130 = scmp.eq.s32.totalorder %s19, 1
    %p131 = por %p129, %p130
    %p133 = scmp.ne.s32.totalorder %s118, %s132
    %p134 = scmp.eq.s32.totalorder %s19, 0
    %p135 = por %p133, %p134
    %s137 = sadd.s32 %s136, 1
    %p140 = scmp.eq.s32.totalorder %s13, 1
    %p141 = scmp.ne.s32.totalorder %s136, %s138
    %p142 = scmp.eq.s32.totalorder %s13, 0
    %p143 = por %p141, %p142
    %p144 = scmp.ne.s32.totalorder %s136, %s138
    %p145 = scmp.eq.s32.totalorder %s18, 1
    %p146 = por %p144, %p145
    %p147 = scmp.ne.s32.totalorder %s138, %s139
    %p148 = scmp.eq.s32.totalorder %s18, 0
    %p149 = por %p147, %p148
    %p150 = scmp.ne.s32.totalorder %s138, %s139
    %p151 = scmp.eq.s32.totalorder %s19, 1
    %p152 = por %p150, %p151
    %p154 = scmp.ne.s32.totalorder %s139, %s153
    %p155 = scmp.eq.s32.totalorder %s19, 0
    %p156 = por %p154, %p155
    %s158 = sadd.s32 %s157, 1
    %p161 = scmp.eq.s32.totalorder %s13, 1
    %p162 = scmp.ne.s32.totalorder %s157, %s159
    %p163 = scmp.eq.s32.totalorder %s13, 0
    %p164 = por %p162, %p163
    %p165 = scmp.ne.s32.totalorder %s157, %s159
    %p166 = scmp.eq.s32.totalorder %s18, 1
    %p167 = por %p165, %p166
    %p168 = scmp.ne.s32.totalorder %s159, %s160
    %p169 = scmp.eq.s32.totalorder %s18, 0
    %p170 = por %p168, %p169
    %p171 = scmp.ne.s32.totalorder %s159, %s160
    %p172 = scmp.eq.s32.totalorder %s19, 1
    %p173 = por %p171, %p172
    %p175 = scmp.ne.s32.totalorder %s160, %s174
    %p176 = scmp.eq.s32.totalorder %s19, 0
    %p177 = por %p175, %p176
    %s178 = ssub.s32 %s13, %s20
    %p179 = scmp.eq.s32.totalorder %s178, 0
    %s181 = sadd.s32 %s180, 1
    %s182 = scalar_select %p179, %s180, %s181
    %p185 = pneg %p179
    %p186 = scmp.eq.s32.totalorder %s13, 1
    %p187 = por %p185, %p186
    %p188 = scmp.ne.s32.totalorder %s180, %s183
    %p189 = scmp.eq.s32.totalorder %s13, 0
    %p190 = por %p188, %p189
    %p191 = scmp.ne.s32.totalorder %s180, %s183
    %p192 = scmp.eq.s32.totalorder %s18, 1
    %p193 = por %p191, %p192
    %p194 = scmp.ne.s32.totalorder %s183, %s184
    %p195 = scmp.eq.s32.totalorder %s18, 0
    %p196 = por %p194, %p195
    %p197 = scmp.ne.s32.totalorder %s183, %s184
    %p198 = scmp.eq.s32.totalorder %s19, 1
    %p199 = por %p197, %p198
    %p201 = scmp.ne.s32.totalorder %s184, %s200
    %p202 = scmp.eq.s32.totalorder %s19, 0
    %p203 = por %p201, %p202
    %p204 = scmp.le.s32.totalorder 1, %s13
    %p205 = scmp.lt.s32.totalorder %s13, 3
    %p206 = pnand %p204, %p205
    %p207 = pneg %p206
    // Predicated region
    $region9: #{conv_lstm_combiner.1} parent=5 // pred_check
      _
    $region10: #{conv_lstm_combiner.1} parent=5 // pred_check_branch
      %209 = sbr.rel (%p206) target = $region12
    $region11: #{conv_lstm_combiner.1} parent=5 // pred_region
      %s210 = ssub.s32 %s13, 1
      // Predicated region
      $region13: #{conv_lstm_combiner.1} parent=11 // pred_check
        %p211 = pneg %p86
      $region14: #{conv_lstm_combiner.1} parent=11 // pred_check_branch
        %213 = sbr.rel (%p211) target = $region16
      $region15: #{conv_lstm_combiner.1} parent=11 // pred_region
        _
      $region16: #{conv_lstm_combiner.1} parent=11 // pred_fallthru
        _
      // Predicated region
      $region17: #{conv_lstm_combiner.1} parent=11 // pred_check
        %p214 = pneg %p107
      $region18: #{conv_lstm_combiner.1} parent=11 // pred_check_branch
        %216 = sbr.rel (%p214) target = $region20
      $region19: #{conv_lstm_combiner.1} parent=11 // pred_region
        _
      $region20: #{conv_lstm_combiner.1} parent=11 // pred_fallthru
        _
      // Predicated region
      $region21: #{conv_lstm_combiner.1} parent=11 // pred_check
        %p217 = pneg %p128
      $region22: #{conv_lstm_combiner.1} parent=11 // pred_check_branch
        %219 = sbr.rel (%p217) target = $region24
      $region23: #{conv_lstm_combiner.1} parent=11 // pred_region
        _
      $region24: #{conv_lstm_combiner.1} parent=11 // pred_fallthru
        _
      // Predicated region
      $region25: #{conv_lstm_combiner.1} parent=11 // pred_check
        %p220 = pneg %p149
      $region26: #{conv_lstm_combiner.1} parent=11 // pred_check_branch
        %222 = sbr.rel (%p220) target = $region28
      $region27: #{conv_lstm_combiner.1} parent=11 // pred_region
        _
      $region28: #{conv_lstm_combiner.1} parent=11 // pred_fallthru
        _
      // Predicated region
      $region29: #{conv_lstm_combiner.1} parent=11 // pred_check
        %p223 = pneg %p170
      $region30: #{conv_lstm_combiner.1} parent=11 // pred_check_branch
        %225 = sbr.rel (%p223) target = $region32
      $region31: #{conv_lstm_combiner.1} parent=11 // pred_region
        _
      $region32: #{conv_lstm_combiner.1} parent=11 // pred_fallthru
        _
    $region12: #{conv_lstm_combiner.1} parent=5 // pred_fallthru
      _
    %p226 = scmp.lt.s32.totalorder %s13, 2
    // Predicated region
    $region33: #{conv_lstm_combiner.1} parent=5 // pred_check
      %p227 = pneg %p226
    $region34: #{conv_lstm_combiner.1} parent=5 // pred_check_branch
      %229 = sbr.rel (%p227) target = $region36
    $region35: #{conv_lstm_combiner.1} parent=5 // pred_region
      // Predicated region
      $region37: #{conv_lstm_combiner.1} parent=35 // pred_check
        %p230 = pneg %p33
      $region38: #{conv_lstm_combiner.1} parent=35 // pred_check_branch
        %232 = sbr.rel (%p230) target = $region40
      $region39: #{conv_lstm_combiner.1} parent=35 // pred_region
        %s233 = smul.u32 2, %s13
        %p234 = scmp.lt.s32.totalorder %s233, 3
        %s235 = scalar_select %p234, %s233, 3
        %s236 = smul.addr %s235, 8
        %s237 = scalar_lea.vmem %s0, %s236
        %s238 = smul.u32 2, %s13
      $region40: #{conv_lstm_combiner.1} parent=35 // pred_fallthru
        _
      // Predicated region
      $region41: #{conv_lstm_combiner.1} parent=35 // pred_check
        %p239 = pneg %p59
      $region42: #{conv_lstm_combiner.1} parent=35 // pred_check_branch
        %241 = sbr.rel (%p239) target = $region44
      $region43: #{conv_lstm_combiner.1} parent=35 // pred_region
        %s242 = smul.u32 2, %s13
        %p243 = scmp.lt.s32.totalorder %s242, 3
        %s244 = scalar_select %p243, %s242, 3
        %s245 = smul.addr %s244, 8
        %s246 = scalar_lea.vmem %s1, %s245
        %s247 = smul.u32 2, %s13
      $region44: #{conv_lstm_combiner.1} parent=35 // pred_fallthru
        _
    $region36: #{conv_lstm_combiner.1} parent=5 // pred_fallthru
      _
    %p248 = scmp.le.s32.totalorder 1, %s13
    %p249 = scmp.lt.s32.totalorder %s13, 3
    %p250 = pnand %p248, %p249
    %p251 = pneg %p250
    // Predicated region
    $region45: #{conv_lstm_combiner.1} parent=5 // pred_check
      _
    $region46: #{conv_lstm_combiner.1} parent=5 // pred_check_branch
      %253 = sbr.rel (%p250) target = $region48
    $region47: #{conv_lstm_combiner.1} parent=5 // pred_region
      %s254 = ssub.s32 %s13, 1
      %s255 = smul.u32 2, %s18
      %p256 = scmp.lt.s32.totalorder %s255, 3
      %s257 = scalar_select %p256, %s255, 3
      %s258 = smul.addr %s257, 8
      %s259 = scalar_lea.vmem %s0, %s258
      %p260 = pneg %p39
      %p261 = pneg %p36
      %s262 = smul.u32 2, %s18
      %p263 = scmp.lt.s32.totalorder %s262, 3
      %s264 = scalar_select %p263, %s262, 3
      %s265 = smul.addr %s264, 8
      %s266 = scalar_lea.vmem %s1, %s265
      %p267 = pneg %p65
      %p268 = pneg %p62
      %p269 = pneg %p86
      %p270 = pneg %p83
      %p271 = pneg %p107
      %p272 = pneg %p104
      %p273 = pneg %p128
      %p274 = pneg %p125
      %p275 = pneg %p149
      %p276 = pneg %p146
      %p277 = pneg %p170
      %p278 = pneg %p167
      %p279 = pneg %p196
      %p280 = pneg %p193
      %s281 = smul.u32 2, %s18
      %p282 = scmp.lt.s32.totalorder %s281, 3
      %s283 = scalar_select %p282, %s281, 3
      %s284 = smul.addr %s283, 8
      %s285 = scalar_lea.vmem %s7, %s284
      %s286 = smul.u32 2, %s18
      %p287 = scmp.lt.s32.totalorder %s286, 3
      %s288 = scalar_select %p287, %s286, 3
      %s289 = smul.addr %s288, 8
      %s290 = scalar_lea.vmem %s0, %s289
      %s291 = smul.u32 2, %s18
      %s292 = smul.u32 2, %s18
      %p293 = scmp.lt.s32.totalorder %s292, 3
      %s294 = scalar_select %p293, %s292, 3
      %s295 = smul.addr %s294, 8
      %s296 = scalar_lea.vmem %s1, %s295
      %s297 = smul.u32 2, %s18
      %s298 = smul.u32 2, %s18
      %p299 = scmp.lt.s32.totalorder %s298, 3
      %s300 = scalar_select %p299, %s298, 3
      %s301 = smul.addr %s300, 8
      %s302 = scalar_lea.vmem %s7, %s301
      %s303 = smul.u32 2, %s18
      %v305 = vld [vmem:[%s290] sm:$0xff]
      %v306 = vld [vmem:[%s290 + $0x8] sm:$0xff]
      %307 = vrot.lane.b32.xlu0 %v305, 17
      %v308 = vpop.permute.xlu0 %307
      %309 = vrot.lane.b32.xlu0 %v306, 17
      %v310 = vpop.permute.xlu0 %309
      %v311 = vlaneseq
      %v312 = vand.u32 %v311, 127
      %vm313 = vcmp.lt.s32.totalorder %v312, 17
      %v314 = vsel %vm313, %v308, %v310
      %v315 = vsel %vm313, %v310, %v308
      %v316 = vld [vmem:[%s6] ss:$8 sm:$0x3]
      %v318 = vlaneseq
      %v319 = vshrl.u32 %v318, 7
      %v320 = vsub.s32 0, %v319
      %v321 = vrot.slane %v316, %v320
      %v322 = vlaneseq
      %v323 = vshrl.u32 %v322, 7
      %v324 = vsub.s32 1, %v323
      %v325 = vrot.slane %v316, %v324
      %v328 = vmul.f32 %v315, %v321
      %v329 = vmul.f32 %v314, %v325
      %330 = vrot.lane.b32.xlu0 %v305, 16
      %v331 = vpop.permute.xlu0 %330
      %332 = vrot.lane.b32.xlu0 %v306, 16
      %v333 = vpop.permute.xlu0 %332
      %vm334 = vcmp.lt.s32.totalorder %v312, 16
      %v335 = vsel %vm334, %v331, %v333
      %v336 = vsel %vm334, %v333, %v331
      %s337 = scalar_lea.vmem %s6, 1
      %v338 = vld [vmem:[%s337] ss:$8 sm:$0x3]
      %v340 = vlaneseq
      %v341 = vshrl.u32 %v340, 7
      %v342 = vsub.s32 0, %v341
      %v343 = vrot.slane %v338, %v342
      %v344 = vlaneseq
      %v345 = vshrl.u32 %v344, 7
      %v346 = vsub.s32 1, %v345
      %v347 = vrot.slane %v338, %v346
      %v350 = vmul.f32 %v336, %v343
      %v351 = vmul.f32 %v335, %v347
      %352 = vrot.lane.b32.xlu0 %v305, 15
      %v353 = vpop.permute.xlu0 %352
      %354 = vrot.lane.b32.xlu0 %v306, 15
      %v355 = vpop.permute.xlu0 %354
      %vm356 = vcmp.lt.s32.totalorder %v312, 15
      %v357 = vsel %vm356, %v353, %v355
      %v358 = vsel %vm356, %v355, %v353
      %s359 = scalar_lea.vmem %s6, 2
      %v360 = vld [vmem:[%s359] ss:$8 sm:$0x3]
      %v362 = vlaneseq
      %v363 = vshrl.u32 %v362, 7
      %v364 = vsub.s32 0, %v363
      %v365 = vrot.slane %v360, %v364
      %v366 = vlaneseq
      %v367 = vshrl.u32 %v366, 7
      %v368 = vsub.s32 1, %v367
      %v369 = vrot.slane %v360, %v368
      %v372 = vmul.f32 %v358, %v365
      %v373 = vmul.f32 %v357, %v369
      %374 = vrot.lane.b32.xlu0 %v305, 1
      %v375 = vpop.permute.xlu0 %374
      %376 = vrot.lane.b32.xlu0 %v306, 1
      %v377 = vpop.permute.xlu0 %376
      %vm378 = vcmp.lt.s32.totalorder %v312, 1
      %v379 = vsel %vm378, %v375, %v377
      %v380 = vsel %vm378, %v377, %v375
      %s381 = scalar_lea.vmem %s6, 3
      %v382 = vld [vmem:[%s381] ss:$8 sm:$0x3]
      %v384 = vlaneseq
      %v385 = vshrl.u32 %v384, 7
      %v386 = vsub.s32 0, %v385
      %v387 = vrot.slane %v382, %v386
      %v388 = vlaneseq
      %v389 = vshrl.u32 %v388, 7
      %v390 = vsub.s32 1, %v389
      %v391 = vrot.slane %v382, %v390
      %v394 = vmul.f32 %v380, %v387
      %v395 = vmul.f32 %v379, %v391
      %396 = vrot.lane.b32.xlu0 %v305, 127
      %v397 = vpop.permute.xlu0 %396
      %398 = vrot.lane.b32.xlu0 %v306, 127
      %v399 = vpop.permute.xlu0 %398
      %vm400 = vcmp.lt.s32.totalorder %v312, 127
      %v401 = vsel %vm400, %v397, %v399
      %v402 = vsel %vm400, %v399, %v397
      %s403 = scalar_lea.vmem %s6, 5
      %v404 = vld [vmem:[%s403] ss:$8 sm:$0x3]
      %v406 = vlaneseq
      %v407 = vshrl.u32 %v406, 7
      %v408 = vsub.s32 0, %v407
      %v409 = vrot.slane %v404, %v408
      %v410 = vlaneseq
      %v411 = vshrl.u32 %v410, 7
      %v412 = vsub.s32 1, %v411
      %v413 = vrot.slane %v404, %v412
      %v416 = vmul.f32 %v401, %v409
      %v417 = vmul.f32 %v402, %v413
      %418 = vrot.lane.b32.xlu0 %v305, 113
      %v419 = vpop.permute.xlu0 %418
      %420 = vrot.lane.b32.xlu0 %v306, 113
      %v421 = vpop.permute.xlu0 %420
      %vm422 = vcmp.lt.s32.totalorder %v312, 113
      %v423 = vsel %vm422, %v419, %v421
      %v424 = vsel %vm422, %v421, %v419
      %s425 = scalar_lea.vmem %s6, 6
      %v426 = vld [vmem:[%s425] ss:$8 sm:$0x3]
      %v428 = vlaneseq
      %v429 = vshrl.u32 %v428, 7
      %v430 = vsub.s32 0, %v429
      %v431 = vrot.slane %v426, %v430
      %v432 = vlaneseq
      %v433 = vshrl.u32 %v432, 7
      %v434 = vsub.s32 1, %v433
      %v435 = vrot.slane %v426, %v434
      %v438 = vmul.f32 %v423, %v431
      %v439 = vmul.f32 %v424, %v435
      %440 = vrot.lane.b32.xlu0 %v305, 112
      %v441 = vpop.permute.xlu0 %440
      %442 = vrot.lane.b32.xlu0 %v306, 112
      %v443 = vpop.permute.xlu0 %442
      %vm444 = vcmp.lt.s32.totalorder %v312, 112
      %v445 = vsel %vm444, %v441, %v443
      %v446 = vsel %vm444, %v443, %v441
      %s447 = scalar_lea.vmem %s6, 7
      %v448 = vld [vmem:[%s447] ss:$8 sm:$0x3]
      %v450 = vlaneseq
      %v451 = vshrl.u32 %v450, 7
      %v452 = vsub.s32 0, %v451
      %v453 = vrot.slane %v448, %v452
      %v454 = vlaneseq
      %v455 = vshrl.u32 %v454, 7
      %v456 = vsub.s32 1, %v455
      %v457 = vrot.slane %v448, %v456
      %v460 = vmul.f32 %v445, %v453
      %v461 = vmul.f32 %v446, %v457
      %462 = vrot.lane.b32.xlu0 %v305, 111
      %v463 = vpop.permute.xlu0 %462
      %464 = vrot.lane.b32.xlu0 %v306, 111
      %v465 = vpop.permute.xlu0 %464
      %vm466 = vcmp.lt.s32.totalorder %v312, 111
      %v467 = vsel %vm466, %v463, %v465
      %v468 = vsel %vm466, %v465, %v463
      %s469 = scalar_lea.vmem %s6, 16
      %v470 = vld [vmem:[%s469] ss:$8 sm:$0x3]
      %v472 = vlaneseq
      %v473 = vshrl.u32 %v472, 7
      %v474 = vsub.s32 0, %v473
      %v475 = vrot.slane %v470, %v474
      %v476 = vlaneseq
      %v477 = vshrl.u32 %v476, 7
      %v478 = vsub.s32 1, %v477
      %v479 = vrot.slane %v470, %v478
      %v482 = vmul.f32 %v467, %v475
      %v483 = vmul.f32 %v468, %v479
      %v484 = vpack.c.bf16 %v350, %v328
      %v485 = vpack.c.bf16 %v351, %v329
      %v486 = vpack.c.bf16 %v394, %v372
      %v487 = vpack.c.bf16 %v395, %v373
      %v488 = vpack.c.bf16 %v416, %v305
      %v489 = vpack.c.bf16 %v417, %v306
      %v490 = vpack.c.bf16 %v460, %v438
      %v491 = vpack.c.bf16 %v461, %v439
      %v492 = vpack.c.bf16 0.0, %v482
      %v493 = vpack.c.bf16 0.0, %v483
      %v494 = vld [vmem:[%s2] sm:$0xf]
      %v495 = vld [vmem:[%s3] sm:$0xff]
      %497 = vset.pattern.permute.xlu0 0
      %498 = vperm.xlu0 %497, %v495
      %v499 = vpop.permute.xlu0 %498
      %vm501 = vcmask 654336
      %v503 = vsel %vm501, %v494, 0
      %505 = vmatprep.subr.bf16.mxu0 %v485
      %506 = vmatpush1.bf16.msra.mxu0 %v484
      %507 = vmatprep.subr.bf16.mxu0 %v487
      %508 = vmatpush1.bf16.msra.mxu0 %v486
      %509 = vmatprep.subr.bf16.mxu0 %v489
      %510 = vmatpush1.bf16.msra.mxu0 %v488
      %511 = vmatprep.subr.bf16.mxu0 %v491
      %512 = vmatpush1.bf16.msra.mxu0 %v490
      %513 = vmatprep.subr.bf16.mxu0 %v493
      %514 = vmatpush1.bf16.msra.mxu0 %v492
      %515 = vmatprep.subr.bf16.mxu0 0
      %516 = vmatpush1.bf16.msra.mxu0 0
      %517 = vmatprep.subr.bf16.mxu0 0
      %518 = vmatpush1.bf16.msra.mxu0 0
      %519 = vmatprep.subr.bf16.mxu0 0
      %520 = vmatpush1.bf16.msra.mxu0 0
      %521 = vmatprep.subr.bf16.mxu0 0
      %522 = vmatpush1.bf16.msra.mxu0 0
      %523 = vmatprep.subr.bf16.mxu0 0
      %524 = vmatpush1.bf16.msra.mxu0 0
      %525 = vmatprep.subr.bf16.mxu0 0
      %526 = vmatpush1.bf16.msra.mxu0 0
      %527 = vmatprep.subr.bf16.mxu0 0
      %528 = vmatpush1.bf16.msra.mxu0 0
      %529 = vmatprep.subr.bf16.mxu0 0
      %530 = vmatpush1.bf16.msra.mxu0 0
      %531 = vmatprep.subr.bf16.mxu0 0
      %532 = vmatpush1.bf16.msra.mxu0 0
      %533 = vmatprep.subr.bf16.mxu0 0
      %534 = vmatpush1.bf16.msra.mxu0 0
      %535 = vmatprep.subr.bf16.mxu0 0
      %536 = vmatpush1.bf16.msra.mxu0 0
      %537 = vmatprep.mubr.bf16.mxu0 0
      %538 = vmatmul.mubr.bf16.gmra.mrb[0].mxu0 %v503
      %v539 = vpop.f32.mrb[0].mxu0
      %v540 = vadd.f32 %v499, %v539
      %v541 = vpop.f32.mrb[0].mxu0
      %v542 = vadd.f32 %v499, %v541
      %v543 = vpop.f32.mrb[0].mxu0
      %v544 = vpop.f32.mrb[0].mxu0
      %545 = vdwg.mxu0
      %v546 = vtanh.pop %v540
      %v547 = vtanh.pop %v542
      %v548 = vld [vmem:[%s296] sm:$0xff]
      %v549 = vld [vmem:[%s296 + $0x8] sm:$0xff]
      %v550 = vadd.f32 %v546, %v548
      %v551 = vadd.f32 %v547, %v549
      %v552 = vmul.f32 %v550, 0.5
      %v553 = vmul.f32 %v551, 0.5
      %554 = vrot.lane.b32.xlu0 %v552, 17
      %v555 = vpop.permute.xlu0 %554
      %556 = vrot.lane.b32.xlu0 %v553, 17
      %v557 = vpop.permute.xlu0 %556
      %v558 = vsel %vm313, %v555, %v557
      %v559 = vsel %vm313, %v557, %v555
      %v560 = vmul.f32 %v559, %v321
      %v561 = vmul.f32 %v558, %v325
      %562 = vrot.lane.b32.xlu0 %v552, 16
      %v563 = vpop.permute.xlu0 %562
      %564 = vrot.lane.b32.xlu0 %v553, 16
      %v565 = vpop.permute.xlu0 %564
      %v566 = vsel %vm334, %v563, %v565
      %v567 = vsel %vm334, %v565, %v563
      %v568 = vmul.f32 %v567, %v343
      %v569 = vmul.f32 %v566, %v347
      %570 = vrot.lane.b32.xlu0 %v552, 15
      %v571 = vpop.permute.xlu0 %570
      %572 = vrot.lane.b32.xlu0 %v553, 15
      %v573 = vpop.permute.xlu0 %572
      %v574 = vsel %vm356, %v571, %v573
      %v575 = vsel %vm356, %v573, %v571
      %v576 = vmul.f32 %v575, %v365
      %v577 = vmul.f32 %v574, %v369
      %578 = vrot.lane.b32.xlu0 %v552, 1
      %v579 = vpop.permute.xlu0 %578
      %580 = vrot.lane.b32.xlu0 %v553, 1
      %v581 = vpop.permute.xlu0 %580
      %v582 = vsel %vm378, %v579, %v581
      %v583 = vsel %vm378, %v581, %v579
      %v584 = vmul.f32 %v583, %v387
      %v585 = vmul.f32 %v582, %v391
      %586 = vrot.lane.b32.xlu0 %v552, 127
      %v587 = vpop.permute.xlu0 %586
      %588 = vrot.lane.b32.xlu0 %v553, 127
      %v589 = vpop.permute.xlu0 %588
      %v590 = vsel %vm400, %v587, %v589
      %v591 = vsel %vm400, %v589, %v587
      %v592 = vmul.f32 %v590, %v409
      %v593 = vmul.f32 %v591, %v413
      %594 = vrot.lane.b32.xlu0 %v552, 113
      %v595 = vpop.permute.xlu0 %594
      %596 = vrot.lane.b32.xlu0 %v553, 113
      %v597 = vpop.permute.xlu0 %596
      %v598 = vsel %vm422, %v595, %v597
      %v599 = vsel %vm422, %v597, %v595
      %v600 = vmul.f32 %v598, %v431
      %v601 = vmul.f32 %v599, %v435
      %602 = vrot.lane.b32.xlu0 %v552, 112
      %v603 = vpop.permute.xlu0 %602
      %604 = vrot.lane.b32.xlu0 %v553, 112
      %v605 = vpop.permute.xlu0 %604
      %v606 = vsel %vm444, %v603, %v605
      %v607 = vsel %vm444, %v605, %v603
      %v608 = vmul.f32 %v606, %v453
      %v609 = vmul.f32 %v607, %v457
      %610 = vrot.lane.b32.xlu0 %v552, 111
      %v611 = vpop.permute.xlu0 %610
      %612 = vrot.lane.b32.xlu0 %v553, 111
      %v613 = vpop.permute.xlu0 %612
      %v614 = vsel %vm466, %v611, %v613
      %v615 = vsel %vm466, %v613, %v611
      %v616 = vmul.f32 %v614, %v475
      %v617 = vmul.f32 %v615, %v479
      %v618 = vpack.c.bf16 %v568, %v560
      %v619 = vpack.c.bf16 %v569, %v561
      %v620 = vpack.c.bf16 %v584, %v576
      %v621 = vpack.c.bf16 %v585, %v577
      %v622 = vpack.c.bf16 %v592, %v552
      %v623 = vpack.c.bf16 %v593, %v553
      %v624 = vpack.c.bf16 %v608, %v600
      %v625 = vpack.c.bf16 %v609, %v601
      %v626 = vpack.c.bf16 0.0, %v616
      %v627 = vpack.c.bf16 0.0, %v617
      %v628 = vld [vmem:[%s4] sm:$0xf]
      %v629 = vld [vmem:[%s5] sm:$0xff]
      %631 = vset.pattern.permute.xlu0 0
      %632 = vperm.xlu0 %631, %v629
      %v633 = vpop.permute.xlu0 %632
      %v636 = vsel %vm501, %v628, 0
      %638 = vmatprep.subr.bf16.mxu0 %v619
      %639 = vmatpush1.bf16.msra.mxu0 %v618
      %640 = vmatprep.subr.bf16.mxu0 %v621
      %641 = vmatpush1.bf16.msra.mxu0 %v620
      %642 = vmatprep.subr.bf16.mxu0 %v623
      %643 = vmatpush1.bf16.msra.mxu0 %v622
      %644 = vmatprep.subr.bf16.mxu0 %v625
      %645 = vmatpush1.bf16.msra.mxu0 %v624
      %646 = vmatprep.subr.bf16.mxu0 %v627
      %647 = vmatpush1.bf16.msra.mxu0 %v626
      %648 = vmatprep.subr.bf16.mxu0 0
      %649 = vmatpush1.bf16.msra.mxu0 0
      %650 = vmatprep.subr.bf16.mxu0 0
      %651 = vmatpush1.bf16.msra.mxu0 0
      %652 = vmatprep.subr.bf16.mxu0 0
      %653 = vmatpush1.bf16.msra.mxu0 0
      %654 = vmatprep.subr.bf16.mxu0 0
      %655 = vmatpush1.bf16.msra.mxu0 0
      %656 = vmatprep.subr.bf16.mxu0 0
      %657 = vmatpush1.bf16.msra.mxu0 0
      %658 = vmatprep.subr.bf16.mxu0 0
      %659 = vmatpush1.bf16.msra.mxu0 0
      %660 = vmatprep.subr.bf16.mxu0 0
      %661 = vmatpush1.bf16.msra.mxu0 0
      %662 = vmatprep.subr.bf16.mxu0 0
      %663 = vmatpush1.bf16.msra.mxu0 0
      %664 = vmatprep.subr.bf16.mxu0 0
      %665 = vmatpush1.bf16.msra.mxu0 0
      %666 = vmatprep.subr.bf16.mxu0 0
      %667 = vmatpush1.bf16.msra.mxu0 0
      %668 = vmatprep.subr.bf16.mxu0 0
      %669 = vmatpush1.bf16.msra.mxu0 0
      %670 = vmatprep.mubr.bf16.mxu0 0
      %671 = vmatmul.mubr.bf16.gmra.mrb[0].mxu0 %v636
      %v672 = vpop.f32.mrb[0].mxu0
      %v673 = vadd.f32 %v633, %v672
      %v674 = vpop.f32.mrb[0].mxu0
      %v675 = vadd.f32 %v633, %v674
      %v676 = vpop.f32.mrb[0].mxu0
      %v677 = vpop.f32.mrb[0].mxu0
      %678 = vdwg.mxu0
      %v679 = vlaneseq
      %v680 = vshrl.u32 %v679, 7
      %v681 = vmin.f32 %v673, 20.0
      %v682 = vmin.f32 %v675, 20.0
      %vm683 = vcmp.gt.f32.partialorder %v673, 20.0
      %vm684 = vcmp.gt.f32.partialorder %v675, 20.0
      %v685 = vmul.f32 %v681, 1.442695
      %v686 = vpow.pop %v685
      %v687 = vmul.f32 %v682, 1.442695
      %v688 = vpow.pop %v687
      %v689 = vadd.f32 %v686, 1.0
      %v690 = vadd.f32 %v688, 1.0
      %v691 = vlog2.pop %v689
      %v692 = vmul.f32 %v691, 0.6931472
      %v693 = vlog2.pop %v690
      %v694 = vmul.f32 %v693, 0.6931472
      %v695 = vsel %vm683, %v673, %v692
      %v696 = vsel %vm684, %v675, %v694
      %v697 = vmax.f32 %v695, 0.0001
      %v698 = vmax.f32 %v696, 0.0001
      %vm699 = vcmp.lt.s32.totalorder %v680, 4
      %v700 = vsel %vm699, %v673, %v697
      %v701 = vsel %vm699, %v675, %v698
      %702 = vst [vmem:[%s302] sm:$0xff] %v700
      %703 = vst [vmem:[%s302 + $0x8] sm:$0xff] %v701
      %s704 = smul.u32 2, %s18
      %p705 = scmp.lt.s32.totalorder %s704, 3
      %s706 = scalar_select %p705, %s704, 3
      %s707 = smul.addr %s706, 8
      %s708 = scalar_lea.vmem %s7, %s707
      // Predicated region
      $region49: #{conv_lstm_combiner.1} parent=47 // pred_check
        %p709 = pneg %p193
      $region50: #{conv_lstm_combiner.1} parent=47 // pred_check_branch
        %711 = sbr.rel (%p709) target = $region52
      $region51: #{conv_lstm_combiner.1} parent=47 // pred_region
        %s712 = smul.u32 2, %s18
      $region52: #{conv_lstm_combiner.1} parent=47 // pred_fallthru
        _
    $region48: #{conv_lstm_combiner.1} parent=5 // pred_fallthru
      _
    %p713 = scmp.le.s32.totalorder 2, %s13
    // Predicated region
    $region53: #{conv_lstm_combiner.1} parent=5 // pred_check
      %p714 = pneg %p713
    $region54: #{conv_lstm_combiner.1} parent=5 // pred_check_branch
      %716 = sbr.rel (%p714) target = $region56
    $region55: #{conv_lstm_combiner.1} parent=5 // pred_region
      %s717 = ssub.s32 %s13, 2
      // Predicated region
      $region57: #{conv_lstm_combiner.1} parent=55 // pred_check
        %p718 = pneg %p199
      $region58: #{conv_lstm_combiner.1} parent=55 // pred_check_branch
        %720 = sbr.rel (%p718) target = $region60
      $region59: #{conv_lstm_combiner.1} parent=55 // pred_region
        %s721 = smul.u32 2, %s19
        %p722 = scmp.lt.s32.totalorder %s721, 3
        %s723 = scalar_select %p722, %s721, 3
        %s724 = smul.addr %s723, 8
        %s725 = scalar_lea.vmem %s7, %s724
      $region60: #{conv_lstm_combiner.1} parent=55 // pred_fallthru
        _
    $region56: #{conv_lstm_combiner.1} parent=5 // pred_fallthru
      _
  $region6: #{conv_lstm_combiner.1} parent=0 // loop_footer
    %s17 = sadd.s32 1, %s13
  $region7: #{conv_lstm_combiner.1} parent=0 // loop_footer_branch
    %12 = sbr.rel target = $region3
  $region8: #{conv_lstm_combiner.1} parent=0 // loop_exit
    _

</llo_original>
